<compile_context>
chip_gen: v7x
topology: tpu7x:2x2x1
jax: 0.10.0
libtpu: 0.0.40
codegen_flags: <defaults>
</compile_context>

<pallas_src>
import jax
import jax.numpy as jnp
import numpy as np
from jax.experimental import pallas as pl
from jax.experimental.pallas import tpu as pltpu


def transition_kernel(x_ref, pool_ref, w_ref, scale_ref, bias_ref, o_ref):
    # x_ref:     (1, Cin, S)    bf16, S = row_tile * W flattened input pixels
    # pool_ref:  (S, Sp)        bf16, 2x2/stride-2 average-pool matrix, Sp = S//4
    # w_ref:     (Cout, Cin)    bf16, 1x1 conv weight
    # scale_ref: (Cin, 1)       f32, folded BN scale = gamma / sqrt(var + eps)
    # bias_ref:  (Cin, 1)       f32, folded BN bias  = beta - mean * scale
    # o_ref:     (1, Cout, Sp)  f32
    x = x_ref[0].astype(jnp.float32)                         # (Cin, S)

    # BatchNorm (folded) + ReLU in f32 on the VPU.
    h = jnp.maximum(x * scale_ref[...] + bias_ref[...], 0.0)  # (Cin, S)

    # 2x2 average pool expressed as a matmul over the flattened spatial axis
    # (pool BEFORE the 1x1 conv -- both are linear, 4x fewer conv FLOPs).
    pooled = jnp.dot(h.astype(jnp.bfloat16), pool_ref[...],
                     preferred_element_type=jnp.float32)      # (Cin, Sp)

    # 1x1 conv == channel matmul; the MXU N (lane) dim is the pixel dim,
    # so the output store is lane-dense in the NCHW layout.
    y = jnp.dot(w_ref[...], pooled.astype(jnp.bfloat16),
                preferred_element_type=jnp.float32)           # (Cout, Sp)

    o_ref[0] = y.astype(o_ref.dtype)


def _row_tile_ok(H, W, th):
    # Valid row tile: even, divides H, and input/output flattened blocks
    # satisfy the TPU block-shape rule (last dim multiple of 128 or full dim).
    if th <= 0 or th % 2 != 0 or H % th != 0:
        return False
    return th == H or ((th // 2) * (W // 2)) % 128 == 0


def _auto_row_tile(H, W, max_block_pixels=4096):
    # Largest legal even row tile whose flattened block stays modest
    # (keeps double-buffered blocks well under the scoped VMEM limit on v7x).
    for th in range(H, 0, -1):
        if _row_tile_ok(H, W, th) and th * W <= max_block_pixels:
            return th
    return H  # fallback: whole image per step (always legal)


def _pool_matrix(row_tile, W):
    # Constant (S, Sp) matrix implementing the 2x2/stride-2 average pool on
    # row-major flattened pixels of a `row_tile` x W slab.
    S = row_tile * W
    Wo = W // 2
    Sp = (row_tile // 2) * Wo
    i = np.arange(S)
    rh, cw = i // W, i % W
    j = (rh // 2) * Wo + (cw // 2)
    P = np.zeros((S, Sp), dtype=np.float32)
    P[i, j] = 0.25
    return jnp.asarray(P, dtype=jnp.bfloat16)   # 0.25 is exact in bf16


def transition_block(x_nchw, conv_w, gamma, beta, run_mean, run_var,
                     eps=1e-5, drop_rate=0.0, row_tile=None):
    """x_nchw: (N, Cin, H, W); conv_w: (Cout, Cin, 1, 1) (PyTorch layouts)."""
    # TODO(synk): drop_rate > 0 (training-mode dropout) not implemented; this
    # module instance uses dropRate=0.0 so that branch is never taken.
    del drop_rate

    N, Cin, H, W = x_nchw.shape
    Cout = conv_w.shape[0]
    assert H % 2 == 0 and W % 2 == 0, "avg_pool2d(2) needs even spatial dims"

    if row_tile is None:
        row_tile = _auto_row_tile(H, W)
    assert _row_tile_ok(H, W, row_tile), f"invalid row_tile={row_tile}"

    Ho, Wo = H // 2, W // 2
    S = row_tile * W            # flattened input pixels per block
    Sp = (row_tile // 2) * Wo   # flattened output pixels per block
    n_row_tiles = H // row_tile

    # Fold BN (inference mode / running stats) into per-channel scale & bias.
    scale = gamma / jnp.sqrt(run_var + eps)
    bias = beta - run_mean * scale
    scale2 = scale.reshape(Cin, 1).astype(jnp.float32)
    bias2 = bias.reshape(Cin, 1).astype(jnp.float32)

    # Free (metadata-only) reshapes -- no transpose, no extra HBM round trip.
    # bf16 halves the HBM read traffic of this memory-bound op; in a full
    # network the producing layer would already emit bf16 activations.
    x_flat = x_nchw.reshape(N, Cin, H * W).astype(jnp.bfloat16)
    w_mat = conv_w.reshape(Cout, Cin).astype(jnp.bfloat16)
    pool_mat = _pool_matrix(row_tile, W)

    out_flat = pl.pallas_call(
        transition_kernel,
        out_shape=jax.ShapeDtypeStruct((N, Cout, Ho * Wo), jnp.float32),
        grid_spec=pltpu.PrefetchScalarGridSpec(
            num_scalar_prefetch=0,
            grid=(N, n_row_tiles),
            in_specs=[
                pl.BlockSpec((1, Cin, S), lambda n, t: (n, 0, t)),
                pl.BlockSpec((S, Sp), lambda n, t: (0, 0)),
                pl.BlockSpec((Cout, Cin), lambda n, t: (0, 0)),
                pl.BlockSpec((Cin, 1), lambda n, t: (0, 0)),
                pl.BlockSpec((Cin, 1), lambda n, t: (0, 0)),
            ],
            out_specs=pl.BlockSpec((1, Cout, Sp), lambda n, t: (n, 0, t)),
        ),
        compiler_params=pltpu.CompilerParams(
            dimension_semantics=("parallel", "parallel")),
        # Note: on v5e, pipeline depth could be raised further with
        # pipeline_mode=pl.Buffered(3) on the x BlockSpec once row-tiled.
    )(x_flat, pool_mat, w_mat, scale2, bias2)

    # Free reshape back to NCHW spatial layout.
    return out_flat.reshape(N, Cout, Ho, Wo)


def reference(x_nchw, conv_w, gamma, beta, run_mean, run_var, eps=1e-5):
    # Pure-JAX f32 reference (same math, NCHW).
    scale = gamma / jnp.sqrt(run_var + eps)
    bias = beta - run_mean * scale
    h = x_nchw * scale[None, :, None, None] + bias[None, :, None, None]
    h = jnp.maximum(h, 0.0)
    y = jnp.einsum("nchw,oc->nohw", h, conv_w.reshape(conv_w.shape[0], -1))
    N, Co, H, W = y.shape
    y = y.reshape(N, Co, H // 2, 2, W // 2, 2).mean(axis=(3, 5))
    return y


if __name__ == "__main__":
    key = jax.random.PRNGKey(0)
    N, Cin, Cout = 2, 4, 8

    cases = [
        # (H, W, row_tile): 16x16 -> single spatial tile (auto-chosen),
        #                   32x32 -> genuine 2x2 (batch x row-tile) grid.
        (16, 16, None),
        (32, 32, 16),
    ]
    for idx, (H, W, row_tile) in enumerate(cases):
        k = jax.random.fold_in(key, idx)
        k_x, k_w, k_g, k_b, k_m, k_v = jax.random.split(k, 6)

        x = jax.random.normal(k_x, (N, Cin, H, W), dtype=jnp.float32)
        conv_w = jax.random.normal(k_w, (Cout, Cin, 1, 1), dtype=jnp.float32) * 0.1
        gamma = 1.0 + 0.1 * jax.random.normal(k_g, (Cin,), dtype=jnp.float32)
        beta = 0.1 * jax.random.normal(k_b, (Cin,), dtype=jnp.float32)
        run_mean = 0.1 * jax.random.normal(k_m, (Cin,), dtype=jnp.float32)
        run_var = jnp.abs(jax.random.normal(k_v, (Cin,), dtype=jnp.float32)) + 0.5

        out = transition_block(x, conv_w, gamma, beta, run_mean, run_var,
                               row_tile=row_tile)
        out = jax.block_until_ready(out)

        ref = reference(x, conv_w, gamma, beta, run_mean, run_var)
        # bf16 activations/weights on the MXU -> bf16-level tolerance vs f32 ref.
        np.testing.assert_allclose(np.asarray(out), np.asarray(ref),
                                   rtol=2e-2, atol=5e-2)
        assert out.shape == (N, Cout, H // 2, W // 2)

    print("KERNEL_OK")
</pallas_src>

<mosaic_0001>
module attributes {stable_mosaic.version = 11 : i64} {
  func.func @transition_kernel(%arg0: i32, %arg1: i32, %arg2: memref<1x4x256xbf16, #tpu.memory_space<vmem>>, %arg3: memref<256x64xbf16, #tpu.memory_space<vmem>>, %arg4: memref<8x4xbf16, #tpu.memory_space<vmem>>, %arg5: memref<4x1xf32, #tpu.memory_space<vmem>>, %arg6: memref<4x1xf32, #tpu.memory_space<vmem>>, %arg7: memref<1x8x64xf32, #tpu.memory_space<vmem>>) attributes {dimension_semantics = [#tpu.dimension_semantics<parallel>, #tpu.dimension_semantics<parallel>], iteration_bounds = array<i64: 2, 1>, scalar_prefetch = 0 : i64, scratch_operands = 0 : i64, tpu.core_type = #tpu.core_type<tc>, window_params = [{transform_indices = @transform_0, window_bounds = array<i64: 1, 4, 256>}, {pipeline_mode = #tpu.pipeline_mode<synchronous>, transform_indices = @transform_1, window_bounds = array<i64: 256, 64>}, {pipeline_mode = #tpu.pipeline_mode<synchronous>, transform_indices = @transform_2, window_bounds = array<i64: 8, 4>}, {pipeline_mode = #tpu.pipeline_mode<synchronous>, transform_indices = @transform_3, window_bounds = array<i64: 4, 1>}, {pipeline_mode = #tpu.pipeline_mode<synchronous>, transform_indices = @transform_4, window_bounds = array<i64: 4, 1>}, {transform_indices = @transform_5, window_bounds = array<i64: 1, 8, 64>}]} {
    %c0 = arith.constant 0 : index
    %c0_0 = arith.constant 0 : index
    %c0_1 = arith.constant 0 : index
    %0 = vector.load %arg2[%c0, %c0_0, %c0_1] : memref<1x4x256xbf16, #tpu.memory_space<vmem>>, vector<1x4x256xbf16>
    %1 = vector.shape_cast %0 : vector<1x4x256xbf16> to vector<4x256xbf16>
    %2 = arith.extf %1 : vector<4x256xbf16> to vector<4x256xf32>
    %c0_2 = arith.constant 0 : index
    %c0_3 = arith.constant 0 : index
    %3 = vector.load %arg5[%c0_2, %c0_3] : memref<4x1xf32, #tpu.memory_space<vmem>>, vector<4x1xf32>
    %4 = vector.broadcast %3 : vector<4x1xf32> to vector<4x256xf32>
    %5 = arith.mulf %2, %4 : vector<4x256xf32>
    %c0_4 = arith.constant 0 : index
    %c0_5 = arith.constant 0 : index
    %6 = vector.load %arg6[%c0_4, %c0_5] : memref<4x1xf32, #tpu.memory_space<vmem>>, vector<4x1xf32>
    %7 = vector.broadcast %6 : vector<4x1xf32> to vector<4x256xf32>
    %8 = arith.addf %5, %7 : vector<4x256xf32>
    %cst = arith.constant 0.000000e+00 : f32
    %9 = vector.broadcast %cst : f32 to vector<4x256xf32>
    %10 = arith.maximumf %8, %9 : vector<4x256xf32>
    %11 = arith.truncf %10 : vector<4x256xf32> to vector<4x256xbf16>
    %c0_6 = arith.constant 0 : index
    %c0_7 = arith.constant 0 : index
    %12 = vector.load %arg3[%c0_6, %c0_7] : memref<256x64xbf16, #tpu.memory_space<vmem>>, vector<256x64xbf16>
    %cst_8 = arith.constant dense<0.000000e+00> : vector<4x64xf32>
    %13 = tpu.matmul %11, %12, %cst_8 {dimension_numbers = #tpu.dot_dimension_numbers<[1], [0], [0], [1], [0, 0, 1, 1], [], []>} : vector<4x256xbf16>, vector<256x64xbf16>, vector<4x64xf32> -> vector<4x64xf32>
    %c0_9 = arith.constant 0 : index
    %c0_10 = arith.constant 0 : index
    %14 = vector.load %arg4[%c0_9, %c0_10] : memref<8x4xbf16, #tpu.memory_space<vmem>>, vector<8x4xbf16>
    %15 = arith.truncf %13 : vector<4x64xf32> to vector<4x64xbf16>
    %cst_11 = arith.constant dense<0.000000e+00> : vector<8x64xf32>
    %16 = tpu.matmul %14, %15, %cst_11 {dimension_numbers = #tpu.dot_dimension_numbers<[1], [0], [0], [1], [0, 0, 1, 1], [], []>} : vector<8x4xbf16>, vector<4x64xbf16>, vector<8x64xf32> -> vector<8x64xf32>
    %c0_12 = arith.constant 0 : index
    %c0_13 = arith.constant 0 : index
    %c0_14 = arith.constant 0 : index
    %17 = vector.load %arg7[%c0_12, %c0_13, %c0_14] : memref<1x8x64xf32, #tpu.memory_space<vmem>>, vector<1x8x64xf32>
    %18 = vector.shape_cast %17 : vector<1x8x64xf32> to vector<8x64xf32>
    %19 = vector.shape_cast %16 : vector<8x64xf32> to vector<1x8x64xf32>
    tpu.vector_store %arg7[%c0_12, %c0_13, %c0_14], %19 {strides = array<i32>} : memref<1x8x64xf32, #tpu.memory_space<vmem>>, vector<1x8x64xf32>,
    return
  }
  func.func @transform_0(%arg0: i32, %arg1: i32) -> (i32, i32, i32) {
    %c0_i32 = arith.constant 0 : i32
    %c0_i32_0 = arith.constant 0 : i32
    return %arg0, %c0_i32, %arg1 : i32, i32, i32
  }
  func.func @transform_1(%arg0: i32, %arg1: i32) -> (i32, i32) {
    %c0_i32 = arith.constant 0 : i32
    %c0_i32_0 = arith.constant 0 : i32
    %c0_i32_1 = arith.constant 0 : i32
    return %c0_i32, %c0_i32_0 : i32, i32
  }
  func.func @transform_2(%arg0: i32, %arg1: i32) -> (i32, i32) {
    %c0_i32 = arith.constant 0 : i32
    %c0_i32_0 = arith.constant 0 : i32
    %c0_i32_1 = arith.constant 0 : i32
    return %c0_i32, %c0_i32_0 : i32, i32
  }
  func.func @transform_3(%arg0: i32, %arg1: i32) -> (i32, i32) {
    %c0_i32 = arith.constant 0 : i32
    %c0_i32_0 = arith.constant 0 : i32
    %c0_i32_1 = arith.constant 0 : i32
    return %c0_i32, %c0_i32_0 : i32, i32
  }
  func.func @transform_4(%arg0: i32, %arg1: i32) -> (i32, i32) {
    %c0_i32 = arith.constant 0 : i32
    %c0_i32_0 = arith.constant 0 : i32
    %c0_i32_1 = arith.constant 0 : i32
    return %c0_i32, %c0_i32_0 : i32, i32
  }
  func.func @transform_5(%arg0: i32, %arg1: i32) -> (i32, i32, i32) {
    %c0_i32 = arith.constant 0 : i32
    %c0_i32_0 = arith.constant 0 : i32
    return %arg0, %c0_i32, %arg1 : i32, i32, i32
  }
}

</mosaic_0001>

<llo_original>
// kernel: tpu_custom_call.1
$region0: #{tpu_custom_call.1}
  #allocation0 [shape = 'u32[]', space=smem, size = 0x4, offset = 0x4, fixed_abs, tag = 'smem constant byte address 0x4 - core index']
  #allocation1 [shape = 'u32[144,128]{1,0:T(1,128)}', space=vmem, size = 0x12000, scoped, tag = 'internal scratch']
  %s0 = inlined_call_operand.vmem [shape: bf16[2,4,256], index: 0, kind: input, shape index: {}]
  %s1 = inlined_call_operand.vmem [shape: bf16[256,64], index: 1, kind: input, shape index: {}]
  %s2 = inlined_call_operand.vmem [shape: bf16[8,4], index: 2, kind: input, shape index: {}]
  %s3 = inlined_call_operand.vmem [shape: f32[4,1], index: 3, kind: input, shape index: {}]
  %s4 = inlined_call_operand.vmem [shape: f32[4,1], index: 4, kind: input, shape index: {}]
  %s5 = inlined_call_operand.hbm [shape: f32[2,8,64], index: 5, kind: output, shape index: {}]
  %s6 = sld [smem:[#allocation0]]
  $region53: #{tpu_custom_call.1} parent=0
    _
  %s8 = ssub.s32 1, %s6
  %s9 = scalar_select 0, %s8, %s6
  $region1: #{tpu_custom_call.1} parent=0
    #allocation2 [shape = 'u8[8192]{0}', space=vmem, size = 0x2000, scoped, tag = 'output window, operand 0']
    #allocation3 [shape = 's32[2]{0}', space=sflag, size = 0x8, scoped, tag = 'scoped memory for tpu_custom_call.1']
    %10 = vsyncpa [#allocation3], 0
    %s11 = scalar_lea.sflag [#allocation3], 1
    %12 = vsyncpa %s11, 0
    loop: start=0, step=1, limit=4
    $region2: #{tpu_custom_call.1} parent=1 // loop_pre_header
      _
    $region3: #{tpu_custom_call.1} parent=1 // loop_header
      %s14 = sphi 0, %s18
      %p15 = scmp.ge.s32.totalorder %s14, 4
      %s21 = sphi 0, %s33
      %s22 = sphi 0, %s29
      %s23 = sphi 0, %s21
      %s24 = sphi 0, %s22
      %s25 = sphi 0, %s23
      %s26 = sphi 0, %s24
      %s38 = sphi 0, %s40
      %s41 = sphi 0, %s38
      %s42 = sphi 0, %s41
      %s58 = sphi 0, %s42
      %s62 = sphi 0, %s62
      %s64 = sphi 0, %s62
      %s65 = sphi 0, %s64
      %s79 = sphi 0, %s65
      %s83 = sphi 0, %s83
      %s85 = sphi 0, %s83
      %s86 = sphi 0, %s85
      %s100 = sphi 0, %s86
      %s104 = sphi 0, %s104
      %s106 = sphi 0, %s104
      %s107 = sphi 0, %s106
      %s121 = sphi 0, %s107
      %s125 = sphi 0, %s125
      %s127 = sphi 0, %s125
      %s128 = sphi 0, %s127
      %s142 = sphi 0, %s128
      %s150 = sphi 0, %s152
      %s153 = sphi 0, %s150
      %s154 = sphi 0, %s153
      %s170 = sphi 0, %s154
    $region4: #{tpu_custom_call.1} parent=1 // loop_header_branch
      %17 = sbr.rel (%p15) target = $region8
    $region5: #{tpu_custom_call.1} parent=1 // loop_body
      %s19 = ssub.s32 %s14, 1
      %s20 = ssub.s32 %s14, 2
      %s27 = sadd.s32 1, %s22
      %p28 = scmp.ge.s32.totalorder %s27, 1
      %s29 = scalar_select %p28, 0, %s27
      %s30 = sadd.s32 1, %s21
      %s31 = scalar_select %p28, %s30, %s21
      %p32 = scmp.ge.s32.totalorder %s31, 2
      %s33 = scalar_select %p32, 0, %s31
      %s34 = ssub.s32 %s21, %s33
      %s35 = ssub.s32 %s22, %s29
      %s36 = sor.u32 %s34, %s35
      %p37 = scmp.eq.s32.totalorder %s36, 0
      %s39 = sadd.s32 %s38, 1
      %s40 = scalar_select %p37, %s38, %s39
      %p43 = pneg %p37
      %p44 = scmp.eq.s32.totalorder %s14, 1
      %p45 = por %p43, %p44
      %p46 = scmp.ne.s32.totalorder %s38, %s41
      %p47 = scmp.eq.s32.totalorder %s14, 0
      %p48 = por %p46, %p47
      %p49 = scmp.ne.s32.totalorder %s38, %s41
      %p50 = scmp.eq.s32.totalorder %s19, 1
      %p51 = por %p49, %p50
      %p52 = scmp.ne.s32.totalorder %s41, %s42
      %p53 = scmp.eq.s32.totalorder %s19, 0
      %p54 = por %p52, %p53
      %p55 = scmp.ne.s32.totalorder %s41, %s42
      %p56 = scmp.eq.s32.totalorder %s20, 1
      %p57 = por %p55, %p56
      %p59 = scmp.ne.s32.totalorder %s42, %s58
      %p60 = scmp.eq.s32.totalorder %s20, 0
      %p61 = por %p59, %p60
      %s63 = sadd.s32 %s62, 1
      %p66 = scmp.eq.s32.totalorder %s14, 1
      %p67 = scmp.ne.s32.totalorder %s62, %s64
      %p68 = scmp.eq.s32.totalorder %s14, 0
      %p69 = por %p67, %p68
      %p70 = scmp.ne.s32.totalorder %s62, %s64
      %p71 = scmp.eq.s32.totalorder %s19, 1
      %p72 = por %p70, %p71
      %p73 = scmp.ne.s32.totalorder %s64, %s65
      %p74 = scmp.eq.s32.totalorder %s19, 0
      %p75 = por %p73, %p74
      %p76 = scmp.ne.s32.totalorder %s64, %s65
      %p77 = scmp.eq.s32.totalorder %s20, 1
      %p78 = por %p76, %p77
      %p80 = scmp.ne.s32.totalorder %s65, %s79
      %p81 = scmp.eq.s32.totalorder %s20, 0
      %p82 = por %p80, %p81
      %s84 = sadd.s32 %s83, 1
      %p87 = scmp.eq.s32.totalorder %s14, 1
      %p88 = scmp.ne.s32.totalorder %s83, %s85
      %p89 = scmp.eq.s32.totalorder %s14, 0
      %p90 = por %p88, %p89
      %p91 = scmp.ne.s32.totalorder %s83, %s85
      %p92 = scmp.eq.s32.totalorder %s19, 1
      %p93 = por %p91, %p92
      %p94 = scmp.ne.s32.totalorder %s85, %s86
      %p95 = scmp.eq.s32.totalorder %s19, 0
      %p96 = por %p94, %p95
      %p97 = scmp.ne.s32.totalorder %s85, %s86
      %p98 = scmp.eq.s32.totalorder %s20, 1
      %p99 = por %p97, %p98
      %p101 = scmp.ne.s32.totalorder %s86, %s100
      %p102 = scmp.eq.s32.totalorder %s20, 0
      %p103 = por %p101, %p102
      %s105 = sadd.s32 %s104, 1
      %p108 = scmp.eq.s32.totalorder %s14, 1
      %p109 = scmp.ne.s32.totalorder %s104, %s106
      %p110 = scmp.eq.s32.totalorder %s14, 0
      %p111 = por %p109, %p110
      %p112 = scmp.ne.s32.totalorder %s104, %s106
      %p113 = scmp.eq.s32.totalorder %s19, 1
      %p114 = por %p112, %p113
      %p115 = scmp.ne.s32.totalorder %s106, %s107
      %p116 = scmp.eq.s32.totalorder %s19, 0
      %p117 = por %p115, %p116
      %p118 = scmp.ne.s32.totalorder %s106, %s107
      %p119 = scmp.eq.s32.totalorder %s20, 1
      %p120 = por %p118, %p119
      %p122 = scmp.ne.s32.totalorder %s107, %s121
      %p123 = scmp.eq.s32.totalorder %s20, 0
      %p124 = por %p122, %p123
      %s126 = sadd.s32 %s125, 1
      %p129 = scmp.eq.s32.totalorder %s14, 1
      %p130 = scmp.ne.s32.totalorder %s125, %s127
      %p131 = scmp.eq.s32.totalorder %s14, 0
      %p132 = por %p130, %p131
      %p133 = scmp.ne.s32.totalorder %s125, %s127
      %p134 = scmp.eq.s32.totalorder %s19, 1
      %p135 = por %p133, %p134
      %p136 = scmp.ne.s32.totalorder %s127, %s128
      %p137 = scmp.eq.s32.totalorder %s19, 0
      %p138 = por %p136, %p137
      %p139 = scmp.ne.s32.totalorder %s127, %s128
      %p140 = scmp.eq.s32.totalorder %s20, 1
      %p141 = por %p139, %p140
      %p143 = scmp.ne.s32.totalorder %s128, %s142
      %p144 = scmp.eq.s32.totalorder %s20, 0
      %p145 = por %p143, %p144
      %s146 = ssub.s32 %s21, %s33
      %s147 = ssub.s32 %s22, %s29
      %s148 = sor.u32 %s146, %s147
      %p149 = scmp.eq.s32.totalorder %s148, 0
      %s151 = sadd.s32 %s150, 1
      %s152 = scalar_select %p149, %s150, %s151
      %p155 = pneg %p149
      %p156 = scmp.eq.s32.totalorder %s14, 1
      %p157 = por %p155, %p156
      %p158 = scmp.ne.s32.totalorder %s150, %s153
      %p159 = scmp.eq.s32.totalorder %s14, 0
      %p160 = por %p158, %p159
      %p161 = scmp.ne.s32.totalorder %s150, %s153
      %p162 = scmp.eq.s32.totalorder %s19, 1
      %p163 = por %p161, %p162
      %p164 = scmp.ne.s32.totalorder %s153, %s154
      %p165 = scmp.eq.s32.totalorder %s19, 0
      %p166 = por %p164, %p165
      %p167 = scmp.ne.s32.totalorder %s153, %s154
      %p168 = scmp.eq.s32.totalorder %s20, 1
      %p169 = por %p167, %p168
      %p171 = scmp.ne.s32.totalorder %s154, %s170
      %p172 = scmp.eq.s32.totalorder %s20, 0
      %p173 = por %p171, %p172
      %p174 = scmp.le.s32.totalorder 1, %s14
      %p175 = scmp.lt.s32.totalorder %s14, 3
      %p176 = pnand %p174, %p175
      %p177 = pneg %p176
      // Predicated region
      $region9: #{tpu_custom_call.1} parent=5 // pred_check
        _
      $region10: #{tpu_custom_call.1} parent=5 // pred_check_branch
        %179 = sbr.rel (%p176) target = $region12
      $region11: #{tpu_custom_call.1} parent=5 // pred_region
        %s180 = ssub.s32 %s14, 1
        // Predicated region
        $region13: #{tpu_custom_call.1} parent=11 // pred_check
          %p181 = pneg %p75
        $region14: #{tpu_custom_call.1} parent=11 // pred_check_branch
          %183 = sbr.rel (%p181) target = $region16
        $region15: #{tpu_custom_call.1} parent=11 // pred_region
          _
        $region16: #{tpu_custom_call.1} parent=11 // pred_fallthru
          _
        // Predicated region
        $region17: #{tpu_custom_call.1} parent=11 // pred_check
          %p184 = pneg %p96
        $region18: #{tpu_custom_call.1} parent=11 // pred_check_branch
          %186 = sbr.rel (%p184) target = $region20
        $region19: #{tpu_custom_call.1} parent=11 // pred_region
          _
        $region20: #{tpu_custom_call.1} parent=11 // pred_fallthru
          _
        // Predicated region
        $region21: #{tpu_custom_call.1} parent=11 // pred_check
          %p187 = pneg %p117
        $region22: #{tpu_custom_call.1} parent=11 // pred_check_branch
          %189 = sbr.rel (%p187) target = $region24
        $region23: #{tpu_custom_call.1} parent=11 // pred_region
          _
        $region24: #{tpu_custom_call.1} parent=11 // pred_fallthru
          _
        // Predicated region
        $region25: #{tpu_custom_call.1} parent=11 // pred_check
          %p190 = pneg %p138
        $region26: #{tpu_custom_call.1} parent=11 // pred_check_branch
          %192 = sbr.rel (%p190) target = $region28
        $region27: #{tpu_custom_call.1} parent=11 // pred_region
          _
        $region28: #{tpu_custom_call.1} parent=11 // pred_fallthru
          _
      $region12: #{tpu_custom_call.1} parent=5 // pred_fallthru
        _
      %p193 = scmp.lt.s32.totalorder %s14, 2
      // Predicated region
      $region29: #{tpu_custom_call.1} parent=5 // pred_check
        %p194 = pneg %p193
      $region30: #{tpu_custom_call.1} parent=5 // pred_check_branch
        %196 = sbr.rel (%p194) target = $region32
      $region31: #{tpu_custom_call.1} parent=5 // pred_region
        // Predicated region
        $region33: #{tpu_custom_call.1} parent=31 // pred_check
          %p197 = pneg %p48
        $region34: #{tpu_custom_call.1} parent=31 // pred_check_branch
          %199 = sbr.rel (%p197) target = $region36
        $region35: #{tpu_custom_call.1} parent=31 // pred_region
          %s200 = smul.u32 2, %s22
          %p201 = scmp.lt.s32.totalorder %s21, 1
          %s202 = scalar_select %p201, %s21, 1
          %p203 = scmp.lt.s32.totalorder %s200, 1
          %s204 = scalar_select %p203, %s200, 1
          %s205 = smul.addr %s202, 2
          %s206 = sadd.s32 %s204, %s205
          %s207 = smul.addr %s206, 2
          %s208 = scalar_lea.vmem %s0, %s207
          %s209 = smul.u32 2, %s22
        $region36: #{tpu_custom_call.1} parent=31 // pred_fallthru
          _
      $region32: #{tpu_custom_call.1} parent=5 // pred_fallthru
        _
      %p210 = scmp.le.s32.totalorder 1, %s14
      %p211 = scmp.lt.s32.totalorder %s14, 3
      %p212 = pnand %p210, %p211
      %p213 = pneg %p212
      // Predicated region
      $region37: #{tpu_custom_call.1} parent=5 // pred_check
        _
      $region38: #{tpu_custom_call.1} parent=5 // pred_check_branch
        %215 = sbr.rel (%p212) target = $region40
      $region39: #{tpu_custom_call.1} parent=5 // pred_region
        %s216 = ssub.s32 %s14, 1
        %s217 = smul.u32 2, %s24
        %p218 = scmp.lt.s32.totalorder %s23, 1
        %s219 = scalar_select %p218, %s23, 1
        %p220 = scmp.lt.s32.totalorder %s217, 1
        %s221 = scalar_select %p220, %s217, 1
        %s222 = smul.addr %s219, 2
        %s223 = sadd.s32 %s221, %s222
        %s224 = smul.addr %s223, 2
        %s225 = scalar_lea.vmem %s0, %s224
        %p226 = pneg %p54
        %p227 = pneg %p51
        %p228 = pneg %p75
        %p229 = pneg %p72
        %p230 = pneg %p96
        %p231 = pneg %p93
        %p232 = pneg %p117
        %p233 = pneg %p114
        %p234 = pneg %p138
        %p235 = pneg %p135
        %p236 = pneg %p166
        %p237 = pneg %p163
        %s238 = sand.u32 %s153, 1
        %s239 = scalar_lea.sflag [#allocation3], %s238
        %s240 = sand.u32 %s153, 1
        %s241 = smul.addr %s240, 8
        %s242 = scalar_lea.vmem [#allocation2], %s241
        %s243 = smul.u32 2, %s24
        %p244 = scmp.lt.s32.totalorder %s23, 1
        %s245 = scalar_select %p244, %s23, 1
        %p246 = scmp.lt.s32.totalorder %s243, 1
        %s247 = scalar_select %p246, %s243, 1
        %s248 = smul.addr %s245, 2
        %s249 = sadd.s32 %s247, %s248
        %s250 = smul.addr %s249, 2
        %s251 = scalar_lea.vmem %s0, %s250
        %s252 = smul.u32 2, %s24
        %v254 = vld [vmem:[%s251] sm:$0xf]
        %v255 = vunpack.c.l.bf16 %v254
        %v256 = vld [vmem:[%s3] sm:$0xf]
        %258 = vset.pattern.permute.xlu0 0
        %259 = vperm.xlu0 %258, %v256
        %v260 = vpop.permute.xlu0 %259
        %v262 = vunpack.c.l.s4 839922192
        %v263 = vunpack.c.0.s8 %v262
        %v264 = vlaneseq
        %v265 = vshrl.u32 %v264, 7
        %v266 = vsub.s32 %v263, %v265
        %v267 = vrot.slane %v260, %v266
        %v269 = vmul.f32 %v255, %v267
        %v270 = vld [vmem:[%s4] sm:$0xf]
        %272 = vset.pattern.permute.xlu0 0
        %273 = vperm.xlu0 %272, %v270
        %v274 = vpop.permute.xlu0 %273
        %v276 = vunpack.c.l.s4 839922192
        %v277 = vunpack.c.0.s8 %v276
        %v278 = vlaneseq
        %v279 = vshrl.u32 %v278, 7
        %v280 = vsub.s32 %v277, %v279
        %v281 = vrot.slane %v274, %v280
        %v283 = vadd.f32 %v269, %v281
        %v284 = vmax.f32 %v283, 0.0
        %v286 = vcombine.high %v284, %v284
        %v288 = vpack.c.bf16 %v284, %v284
        %v289 = vpack.c.bf16 %v286, %v286
        %v290 = vld [vmem:[%s1] sm:$0xf]
        %v291 = vld [vmem:[%s1 + $0x4] sm:$0xf]
        %v292 = vld [vmem:[%s1 + $0x8] sm:$0xf]
        %v293 = vld [vmem:[%s1 + $0xc] sm:$0xf]
        %v294 = vld [vmem:[%s1 + $0x10] sm:$0xf]
        %v295 = vld [vmem:[%s1 + $0x14] sm:$0xf]
        %v296 = vld [vmem:[%s1 + $0x18] sm:$0xf]
        %v297 = vld [vmem:[%s1 + $0x1c] sm:$0xf]
        %v298 = vld [vmem:[%s1 + $0x20] sm:$0xf]
        %v299 = vld [vmem:[%s1 + $0x24] sm:$0xf]
        %v300 = vld [vmem:[%s1 + $0x28] sm:$0xf]
        %v301 = vld [vmem:[%s1 + $0x2c] sm:$0xf]
        %v302 = vld [vmem:[%s1 + $0x30] sm:$0xf]
        %v303 = vld [vmem:[%s1 + $0x34] sm:$0xf]
        %v304 = vld [vmem:[%s1 + $0x38] sm:$0xf]
        %v305 = vld [vmem:[%s1 + $0x3c] sm:$0xf]
        %v306 = vld [vmem:[%s1 + $0x40] sm:$0xf]
        %v307 = vld [vmem:[%s1 + $0x44] sm:$0xf]
        %v308 = vld [vmem:[%s1 + $0x48] sm:$0xf]
        %v309 = vld [vmem:[%s1 + $0x4c] sm:$0xf]
        %v310 = vld [vmem:[%s1 + $0x50] sm:$0xf]
        %v311 = vld [vmem:[%s1 + $0x54] sm:$0xf]
        %v312 = vld [vmem:[%s1 + $0x58] sm:$0xf]
        %v313 = vld [vmem:[%s1 + $0x5c] sm:$0xf]
        %v314 = vld [vmem:[%s1 + $0x60] sm:$0xf]
        %v315 = vld [vmem:[%s1 + $0x64] sm:$0xf]
        %v316 = vld [vmem:[%s1 + $0x68] sm:$0xf]
        %v317 = vld [vmem:[%s1 + $0x6c] sm:$0xf]
        %v318 = vld [vmem:[%s1 + $0x70] sm:$0xf]
        %v319 = vld [vmem:[%s1 + $0x74] sm:$0xf]
        %v320 = vld [vmem:[%s1 + $0x78] sm:$0xf]
        %v321 = vld [vmem:[%s1 + $0x7c] sm:$0xf]
        %v354 = vunpack.c.l.b16 %v290
        %v355 = vunpack.c.l.b16 %v291
        %v356 = vunpack.c.l.b16 %v292
        %v357 = vunpack.c.l.b16 %v293
        %v358 = vunpack.c.l.b16 %v294
        %v359 = vunpack.c.l.b16 %v295
        %v360 = vunpack.c.l.b16 %v296
        %v361 = vunpack.c.l.b16 %v297
        %v362 = vunpack.c.l.b16 %v298
        %v363 = vunpack.c.l.b16 %v299
        %v364 = vunpack.c.l.b16 %v300
        %v365 = vunpack.c.l.b16 %v301
        %v366 = vunpack.c.l.b16 %v302
        %v367 = vunpack.c.l.b16 %v303
        %v368 = vunpack.c.l.b16 %v304
        %v369 = vunpack.c.l.b16 %v305
        %v370 = vunpack.c.l.b16 %v306
        %v371 = vunpack.c.l.b16 %v307
        %v372 = vunpack.c.l.b16 %v308
        %v373 = vunpack.c.l.b16 %v309
        %v374 = vunpack.c.l.b16 %v310
        %v375 = vunpack.c.l.b16 %v311
        %v376 = vunpack.c.l.b16 %v312
        %v377 = vunpack.c.l.b16 %v313
        %v378 = vunpack.c.l.b16 %v314
        %v379 = vunpack.c.l.b16 %v315
        %v380 = vunpack.c.l.b16 %v316
        %v381 = vunpack.c.l.b16 %v317
        %v382 = vunpack.c.l.b16 %v318
        %v383 = vunpack.c.l.b16 %v319
        %v384 = vunpack.c.l.b16 %v320
        %v385 = vunpack.c.l.b16 %v321
        %v386 = vpack.c.b16 %v355, %v354
        %v387 = vpack.c.b16 %v357, %v356
        %v388 = vpack.c.b16 %v359, %v358
        %v389 = vpack.c.b16 %v361, %v360
        %v390 = vpack.c.b16 %v363, %v362
        %v391 = vpack.c.b16 %v365, %v364
        %v392 = vpack.c.b16 %v367, %v366
        %v393 = vpack.c.b16 %v369, %v368
        %v394 = vpack.c.b16 %v371, %v370
        %v395 = vpack.c.b16 %v373, %v372
        %v396 = vpack.c.b16 %v375, %v374
        %v397 = vpack.c.b16 %v377, %v376
        %v398 = vpack.c.b16 %v379, %v378
        %v399 = vpack.c.b16 %v381, %v380
        %v400 = vpack.c.b16 %v383, %v382
        %v401 = vpack.c.b16 %v385, %v384
        %418 = vmatprep.subr.bf16.mxu0 0
        %419 = vmatpush1.bf16.msra.mxu0 %v386
        %420 = vmatprep.subr.bf16.mxu0 0
        %421 = vmatpush1.bf16.msra.mxu0 %v387
        %422 = vmatprep.subr.bf16.mxu0 0
        %423 = vmatpush1.bf16.msra.mxu0 %v388
        %424 = vmatprep.subr.bf16.mxu0 0
        %425 = vmatpush1.bf16.msra.mxu0 %v389
        %426 = vmatprep.subr.bf16.mxu0 0
        %427 = vmatpush1.bf16.msra.mxu0 %v390
        %428 = vmatprep.subr.bf16.mxu0 0
        %429 = vmatpush1.bf16.msra.mxu0 %v391
        %430 = vmatprep.subr.bf16.mxu0 0
        %431 = vmatpush1.bf16.msra.mxu0 %v392
        %432 = vmatprep.subr.bf16.mxu0 0
        %433 = vmatpush1.bf16.msra.mxu0 %v393
        %434 = vmatprep.subr.bf16.mxu0 0
        %435 = vmatpush1.bf16.msra.mxu0 %v394
        %436 = vmatprep.subr.bf16.mxu0 0
        %437 = vmatpush1.bf16.msra.mxu0 %v395
        %438 = vmatprep.subr.bf16.mxu0 0
        %439 = vmatpush1.bf16.msra.mxu0 %v396
        %440 = vmatprep.subr.bf16.mxu0 0
        %441 = vmatpush1.bf16.msra.mxu0 %v397
        %442 = vmatprep.subr.bf16.mxu0 0
        %443 = vmatpush1.bf16.msra.mxu0 %v398
        %444 = vmatprep.subr.bf16.mxu0 0
        %445 = vmatpush1.bf16.msra.mxu0 %v399
        %446 = vmatprep.subr.bf16.mxu0 0
        %447 = vmatpush1.bf16.msra.mxu0 %v400
        %448 = vmatprep.subr.bf16.mxu0 0
        %449 = vmatpush1.bf16.msra.mxu0 %v401
        %450 = vmatprep.mubr.bf16.mxu0 %v289
        %451 = vmatmul.mubr.bf16.gmra.mrb[0].mxu0 %v288
        %v452 = vpop.f32.mrb[0].mxu0
        %v453 = vadd.f32 0.0, %v452
        %v454 = vpop.f32.mrb[0].mxu0
        %v455 = vpop.f32.mrb[0].mxu0
        %v456 = vpop.f32.mrb[0].mxu0
        %457 = vdwg.mxu0
        %v458 = vld [vmem:[%s2] sm:$0xf]
        %v459 = vpack.c.bf16 %v453, %v453
        %vm460 = vcmask 31744
        %v462 = vsel %vm460, %v458, 0
        %vm464 = vcmask 1041408
        %v466 = vsel %vm464, %v459, 0
        %468 = vmatprep.subr.bf16.mxu0 0
        %469 = vmatpush1.bf16.msra.mxu0 %v466
        %470 = vmatprep.subr.bf16.mxu0 0
        %471 = vmatpush1.bf16.msra.mxu0 0
        %472 = vmatprep.subr.bf16.mxu0 0
        %473 = vmatpush1.bf16.msra.mxu0 0
        %474 = vmatprep.subr.bf16.mxu0 0
        %475 = vmatpush1.bf16.msra.mxu0 0
        %476 = vmatprep.subr.bf16.mxu0 0
        %477 = vmatpush1.bf16.msra.mxu0 0
        %478 = vmatprep.subr.bf16.mxu0 0
        %479 = vmatpush1.bf16.msra.mxu0 0
        %480 = vmatprep.subr.bf16.mxu0 0
        %481 = vmatpush1.bf16.msra.mxu0 0
        %482 = vmatprep.subr.bf16.mxu0 0
        %483 = vmatpush1.bf16.msra.mxu0 0
        %484 = vmatprep.subr.bf16.mxu0 0
        %485 = vmatpush1.bf16.msra.mxu0 0
        %486 = vmatprep.subr.bf16.mxu0 0
        %487 = vmatpush1.bf16.msra.mxu0 0
        %488 = vmatprep.subr.bf16.mxu0 0
        %489 = vmatpush1.bf16.msra.mxu0 0
        %490 = vmatprep.subr.bf16.mxu0 0
        %491 = vmatpush1.bf16.msra.mxu0 0
        %492 = vmatprep.subr.bf16.mxu0 0
        %493 = vmatpush1.bf16.msra.mxu0 0
        %494 = vmatprep.subr.bf16.mxu0 0
        %495 = vmatpush1.bf16.msra.mxu0 0
        %496 = vmatprep.subr.bf16.mxu0 0
        %497 = vmatpush1.bf16.msra.mxu0 0
        %498 = vmatprep.subr.bf16.mxu0 0
        %499 = vmatpush1.bf16.msra.mxu0 0
        %500 = vmatprep.mubr.bf16.mxu0 0
        %501 = vmatmul.mubr.bf16.gmra.mrb[0].mxu0 %v462
        %v502 = vpop.f32.mrb[0].mxu0
        %v503 = vadd.f32 0.0, %v502
        %v504 = vpop.f32.mrb[0].mxu0
        %v505 = vpop.f32.mrb[0].mxu0
        %v506 = vpop.f32.mrb[0].mxu0
        %507 = vdwg.mxu0
        %vm508 = vcmask 523264
        %509 = vst.msk [vmem:[%s242] sm:$0xff] %vm508, %v503
        %s510 = sand.u32 %s153, 1
        %s511 = scalar_lea.sflag [#allocation3], %s510
        %s512 = sand.u32 %s153, 1
        %s513 = smul.addr %s512, 8
        %s514 = scalar_lea.vmem [#allocation2], %s513
        // Predicated region
        $region41: #{tpu_custom_call.1} parent=39 // pred_check
          %p515 = pneg %p163
        $region42: #{tpu_custom_call.1} parent=39 // pred_check_branch
          %517 = sbr.rel (%p515) target = $region44
        $region43: #{tpu_custom_call.1} parent=39 // pred_region
          %s519 = ssub.s32 128, 128
          %520 = vsyncadd %s511, %s519
          %s521 = sadd.s32 %s24, %s23
          %s522 = smul.addr %s521, 128
          %s523 = scalar_lea.hbm %s5, %s522
          %s525 = sshll.u32 %s514, 4
          %s526 = int_to_ptr.vmem [resolvable:$true] %s525
          %528 = dma.vmem_to_hbm [thread:$0]  %s526, 128, %s523, %s511
        $region44: #{tpu_custom_call.1} parent=39 // pred_fallthru
          _
      $region40: #{tpu_custom_call.1} parent=5 // pred_fallthru
        _
      %p529 = scmp.le.s32.totalorder 2, %s14
      // Predicated region
      $region45: #{tpu_custom_call.1} parent=5 // pred_check
        %p530 = pneg %p529
      $region46: #{tpu_custom_call.1} parent=5 // pred_check_branch
        %532 = sbr.rel (%p530) target = $region48
      $region47: #{tpu_custom_call.1} parent=5 // pred_region
        %s533 = ssub.s32 %s14, 2
        // Predicated region
        $region49: #{tpu_custom_call.1} parent=47 // pred_check
          %p534 = pneg %p169
        $region50: #{tpu_custom_call.1} parent=47 // pred_check_branch
          %536 = sbr.rel (%p534) target = $region52
        $region51: #{tpu_custom_call.1} parent=47 // pred_region
          %s537 = sand.u32 %s154, 1
          %s538 = scalar_lea.sflag [#allocation3], %s537
          %s539 = sand.u32 %s154, 1
          %s540 = smul.addr %s539, 8
          %s541 = scalar_lea.vmem [#allocation2], %s540
          %542 = dma.done %s538, 128
        $region52: #{tpu_custom_call.1} parent=47 // pred_fallthru
          _
      $region48: #{tpu_custom_call.1} parent=5 // pred_fallthru
        _
    $region6: #{tpu_custom_call.1} parent=1 // loop_footer
      %s18 = sadd.s32 1, %s14
    $region7: #{tpu_custom_call.1} parent=1 // loop_footer_branch
      %13 = sbr.rel target = $region3
    $region8: #{tpu_custom_call.1} parent=1 // loop_exit
      _
    %543 = vsyncpa [#allocation3], 1
    %s544 = scalar_lea.sflag [#allocation3], 1
    %545 = vsyncpa %s544, 1

</llo_original>
